<compile_context>
chip_gen: v7x
topology: tpu7x:2x2x1
jax: 0.10.0
libtpu: 0.0.40
codegen_flags: <defaults>
</compile_context>

<pallas_src>
import math
from functools import partial

import jax
import jax.numpy as jnp
from jax.scipy.linalg import solve_triangular
from jax.experimental import pallas as pl
from jax.experimental.pallas import tpu as pltpu


def _round_up(a, b):
    return ((a + b - 1) // b) * b


def _tile_geometry(n, mp, tile_n_req):
    """Pick (tile_n, num_tiles, sub_n, nsub) for the N-tiled hot path."""
    # VMEM-aware cap (intermediates scale with tile_n * mp); sized for v7x's
    # 64 MiB/TC VMEM, generous headroom on v5e/v6e (128 MiB).
    if mp <= 128:
        cap = 2048
    elif mp <= 256:
        cap = 1024
    else:
        cap = 512
    t = max(8, min(_round_up(int(tile_n_req), 8), cap, _round_up(n, 8)))
    nt = -(-n // t)
    # Prefer >= 2 tiles so the "parallel" grid axis can shard across both
    # TensorCores on v7x (harmless on single-TC v5e/v6e).
    if nt == 1 and n > 8:
        t = _round_up(-(-n // 2), 8)
        nt = -(-n // t)
    # Prefer an even tile count (v7x: both cores get equal work). Best effort.
    if nt > 1 and nt % 2 == 1:
        t_alt = max(8, _round_up(-(-n // (nt + 1)), 8))
        nt_alt = -(-n // t_alt)
        if nt_alt % 2 == 0:
            t, nt = t_alt, nt_alt
    # Opportunistic sub-blocking inside a tile (MXU / EUP / XLU overlap).
    sub = t
    for cand in (256, 128, 64):
        if t > cand and t % cand == 0:
            sub = cand
            break
    return t, nt, sub, t // sub


# ---------------------------------------------------------------------------
# Pallas kernel: per-N-tile partial sum of the variational expectation.
#   streamed xy  : (tile_n, daug) f32   [x/ls^2 | -0.5||x||^2/ls^2 | 1 | y]
#   resident zkt : (daug, mp)     f32   augmented-RBF key matrix (transposed)
#   resident rhs : (mp, 2mp+128)  bf16  var * [L^-T | iKuu qL | iKuu q_m pad]
#   out          : (1, 128)       f32   lane-dense per-tile partial
# ---------------------------------------------------------------------------
def _svgp_tile_kernel(xy_ref, zkt_ref, rhs_ref, out_ref, *,
                      variance, sigma2, d_in, tile_n, sub_n, nsub, mp, n_total):
    zkt = zkt_ref[...]                       # resident, hoisted out of the loop
    rhs = rhs_ref[...]                       # resident, hoisted out of the loop
    tile_start = pl.program_id(0) * tile_n

    def sub_block(k, carry):
        nv_acc, sq_acc, vf_acc = carry
        off = k * sub_n
        xy = xy_ref[pl.ds(off, sub_n), :]                          # (sub_n, daug)

        # RBF exponent: one tiny matmul (contraction = daug lanes), f32.
        e = jnp.dot(xy, zkt, preferred_element_type=jnp.float32)   # (sub_n, mp)
        # variance is folded into rhs, so kfu here is exp(exponent) only.
        kfu = jnp.exp(jnp.minimum(e, 0.0)).astype(jnp.bfloat16)

        # One fused MXU matmul: [B | A qL | m_f(+pad)] = Kfu @ [L^-T | iKuu qL | iKuu q_m]
        proj = jnp.dot(kfu, rhs, preferred_element_type=jnp.float32)
        b = proj[:, :mp]                                           # Kfu L^-T
        aql = proj[:, mp:2 * mp]                                   # A qL
        m_f = proj[:, 2 * mp:2 * mp + 1]                           # A q_m
        yv = xy[:, d_in + 2:d_in + 3]                              # y lane

        row_bb = jnp.sum(b * b, axis=1, keepdims=True)             # diag(Kfu iKuu Kuf)
        row_aa = jnp.sum(aql * aql, axis=1, keepdims=True)         # diag(A qS A^T)

        # Mask applied to (sub_n, 1) row sums only (padded rows of the last tile).
        rows = (tile_start + off
                + jax.lax.broadcasted_iota(jnp.int32, (sub_n, 1), 0))
        mask = (rows < n_total).astype(jnp.float32)
        nv = jnp.sum(mask)
        sq = jnp.sum(mask * (yv - m_f) ** 2)
        vf = nv * variance + jnp.sum(mask * (row_aa - row_bb))
        return nv_acc + nv, sq_acc + sq, vf_acc + vf

    init = (jnp.float32(0.0), jnp.float32(0.0), jnp.float32(0.0))
    nv, sq, vf = jax.lax.fori_loop(0, nsub, sub_block, init, unroll=True)

    log_norm = -0.5 * math.log(2.0 * math.pi * sigma2)
    partial_sum = nv * log_norm - 0.5 * (sq + vf) / sigma2
    out_ref[...] = jnp.full((1, 128), partial_sum, jnp.float32)


# ---------------------------------------------------------------------------
# Wrapper: negative ELBO, matching SVGP.forward(x, y)
# ---------------------------------------------------------------------------
def svgp_forward(x, y, z, q_m, q_L_raw, *, variance=1.0, lengthscale=0.5,
                 sigma=0.1, batch_rate=1.0, jitter=1e-6, tile_n=1024):
    N, D = x.shape
    M = z.shape[0]
    var = float(variance)
    ls2 = float(lengthscale) ** 2
    sig2 = float(sigma) ** 2

    daug = _round_up(D + 3, 8)               # compact augmented lane count
    mp = _round_up(M, 128)                   # lane-dense inducing dimension
    tile_n, num_tiles, sub_n, nsub = _tile_geometry(N, mp, tile_n)
    n_pad = num_tiles * tile_n

    x32 = x.astype(jnp.float32)
    y32 = y.astype(jnp.float32).reshape(N, 1)
    z32 = z.astype(jnp.float32)

    # --- single compact streamed input: [x/ls^2 | -0.5||x||^2/ls^2 | 1 | y] ---
    xy = jnp.zeros((n_pad, daug), jnp.float32)
    xy = xy.at[:N, :D].set(x32 / ls2)
    xy = xy.at[:N, D].set(-0.5 * jnp.sum(x32 * x32, axis=1) / ls2)
    xy = xy.at[:N, D + 1].set(1.0)
    xy = xy.at[:N, D + 2].set(y32[:, 0])

    # --- resident RBF key matrix (transposed): cols [z | 1 | -0.5||z||^2/ls^2 | 0] ---
    zz = jnp.sum(z32 * z32, axis=1)
    zkt = jnp.zeros((daug, mp), jnp.float32)
    zkt = zkt.at[:D, :M].set(z32.T)
    zkt = zkt.at[D, :M].set(1.0)
    zkt = zkt.at[D + 1, :M].set(-0.5 * zz / ls2)
    zkt = zkt.at[D + 1, M:].set(-1e9)        # padded inducing cols -> K value 0

    # --- N-independent M x M work (plain JAX): Kuu, Cholesky, KL, fused RHS ---
    d2 = zz[:, None] + zz[None, :] - 2.0 * (z32 @ z32.T)
    Kuu = var * jnp.exp(-0.5 * jnp.maximum(d2, 0.0) / ls2)
    eye = jnp.eye(M, dtype=jnp.float32)
    L = jnp.linalg.cholesky(Kuu + (jitter * var) * eye)
    Linv = solve_triangular(L, eye, lower=True)           # L^{-1}
    iKuu = Linv.T @ Linv                                  # Kuu^{-1} (symmetric)
    qL = jnp.tril(q_L_raw.astype(jnp.float32))
    qm = q_m.astype(jnp.float32).reshape(M, 1)

    logdet_Kuu = 2.0 * jnp.sum(jnp.log(jnp.diag(L)))
    logdet_qS = 2.0 * jnp.sum(jnp.log(jnp.abs(jnp.diag(qL))))
    W = Linv @ qL
    tr_term = jnp.sum(W * W)                              # tr(Kuu^{-1} q_S)
    alpha = Linv @ qm
    quad_term = jnp.sum(alpha * alpha)                    # q_m^T Kuu^{-1} q_m
    kl = 0.5 * (tr_term + quad_term - float(M) + logdet_Kuu - logdet_qS)

    # Fused resident RHS (variance folded in): Kfu_raw @ RHS = [B | A qL | m_f].
    # TODO(synk): bf16 RHS/Kfu give ~0.4% relative error; keep an f32 fall-back if
    #             Kuu is ill-conditioned and the var - rowsum(B^2) cancellation bites.
    rhs = jnp.zeros((mp, 2 * mp + 128), jnp.float32)
    rhs = rhs.at[:M, :M].set(var * Linv.T)                # -> B   = Kfu L^{-T}
    rhs = rhs.at[:M, mp:mp + M].set(var * (iKuu @ qL))    # -> A qL
    rhs = rhs.at[:M, 2 * mp].set(var * (iKuu @ qm)[:, 0]) # -> m_f
    rhs = rhs.astype(jnp.bfloat16)

    # --- VMEM budget derived from actual buffer sizes ---
    est = (2 * tile_n * daug * 4                              # streamed xy (x2 buffers)
           + 2 * (daug * mp * 4 + mp * (2 * mp + 128) * 2)    # resident zkt + rhs (x2)
           + 2 * 128 * 4                                      # output block
           + sub_n * (2 * mp + 128) * 4                       # proj
           + 4 * sub_n * mp * 4)                              # e / kfu / row temporaries
    vmem_bytes = int(min(max(2 * est + (4 << 20), 32 << 20), 64 << 20))

    partials = pl.pallas_call(
        partial(_svgp_tile_kernel, variance=var, sigma2=sig2, d_in=D,
                tile_n=tile_n, sub_n=sub_n, nsub=nsub, mp=mp, n_total=N),
        out_shape=jax.ShapeDtypeStruct((1, 128 * num_tiles), jnp.float32),
        grid=(num_tiles,),
        in_specs=[
            pl.BlockSpec((tile_n, daug), lambda i: (i, 0)),        # streamed x/y
            pl.BlockSpec((daug, mp), lambda i: (0, 0)),            # resident key^T
            pl.BlockSpec((mp, 2 * mp + 128), lambda i: (0, 0)),    # resident fused RHS
        ],
        out_specs=pl.BlockSpec((1, 128), lambda i: (0, i)),
        compiler_params=pltpu.CompilerParams(
            dimension_semantics=("parallel",),
            vmem_limit_bytes=vmem_bytes),
    )(xy, zkt, rhs)

    exp_sum = jnp.sum(partials[0, ::128])
    elbo = float(batch_rate) * exp_sum - kl
    return -elbo


# ---------------------------------------------------------------------------
# Pure-JAX f32 reference (mirrors the PyTorch module's forward) for validation.
# ---------------------------------------------------------------------------
def _svgp_reference(x, y, z, q_m, q_L_raw, *, variance, lengthscale, sigma,
                    batch_rate, jitter=1e-6):
    x = x.astype(jnp.float32)
    z = z.astype(jnp.float32)
    N, _ = x.shape
    M = z.shape[0]
    y = y.astype(jnp.float32).reshape(N, 1)
    var = float(variance)
    ls2 = float(lengthscale) ** 2
    sig2 = float(sigma) ** 2

    def rbf(a, b):
        d2 = (jnp.sum(a * a, 1)[:, None] + jnp.sum(b * b, 1)[None, :]
              - 2.0 * a @ b.T)
        return var * jnp.exp(-0.5 * jnp.maximum(d2, 0.0) / ls2)

    Kuu = rbf(z, z) + (jitter * var) * jnp.eye(M, dtype=jnp.float32)
    Kfu = rbf(x, z)
    qL = jnp.tril(q_L_raw.astype(jnp.float32))
    qS = qL @ qL.T
    qm = q_m.astype(jnp.float32).reshape(M, 1)
    iKuu = jnp.linalg.inv(Kuu)
    A = Kfu @ iKuu
    m_f = A @ qm
    v_f = var + jnp.sum((A @ (qS - Kuu)) * A, axis=1, keepdims=True)  # diag(Kff)=var
    expct = (-0.5 * jnp.log(2.0 * jnp.pi * sig2)
             - ((y - m_f) ** 2 + v_f) / (2.0 * sig2))
    kl = 0.5 * (jnp.trace(iKuu @ qS) + (qm.T @ iKuu @ qm)[0, 0] - float(M)
                + jnp.linalg.slogdet(Kuu)[1]
                - 2.0 * jnp.sum(jnp.log(jnp.abs(jnp.diag(qL)))))
    return -(float(batch_rate) * jnp.sum(expct) - kl)


if __name__ == "__main__":
    key = jax.random.PRNGKey(0)
    M, N, D = 8, 16, 2
    k1, k2, k3, k4 = jax.random.split(key, 4)

    # Deterministic parameter init mirroring SVGP.__init__ (input_dim > 1 branch):
    z = 2.0 * jax.random.uniform(k1, (M, D), dtype=jnp.float32) - 1.0   # inducing pts
    q_m = jax.random.normal(k2, (M, 1), dtype=jnp.float32)              # variational mean
    q_L = jnp.eye(M, dtype=jnp.float32)                                 # variational chol

    x = jax.random.normal(k3, (N, D), dtype=jnp.float32)
    y = jax.random.normal(k4, (N, 1), dtype=jnp.float32)

    hyper = dict(variance=1.0, lengthscale=0.5, sigma=0.1, batch_rate=1.0)

    # tile_n=8 -> 2-tile grid so the pipelined / parallel path is exercised.
    fwd = jax.jit(partial(svgp_forward, tile_n=8, **hyper))
    loss = jax.block_until_ready(fwd(x, y, z, q_m, q_L))
    ref = jax.block_until_ready(_svgp_reference(x, y, z, q_m, q_L, **hyper))

    assert bool(jnp.isfinite(loss)), f"non-finite loss: {loss}"
    rel = abs(float(loss) - float(ref)) / max(1.0, abs(float(ref)))
    assert rel < 0.1, f"kernel {float(loss)} vs reference {float(ref)} (rel={rel})"
    print("KERNEL_OK")
</pallas_src>

<mosaic_0001>
module attributes {stable_mosaic.version = 11 : i64} {
  func.func @_svgp_tile_kernel(%arg0: i32, %arg1: memref<8x8xf32, #tpu.memory_space<vmem>>, %arg2: memref<8x128xf32, #tpu.memory_space<vmem>>, %arg3: memref<128x384xbf16, #tpu.memory_space<vmem>>, %arg4: memref<1x128xf32, #tpu.memory_space<vmem>>) attributes {dimension_semantics = [#tpu.dimension_semantics<parallel>], iteration_bounds = array<i64: 2>, scalar_prefetch = 0 : i64, scratch_operands = 0 : i64, tpu.core_type = #tpu.core_type<tc>, window_params = [{transform_indices = @transform_0, window_bounds = array<i64: 8, 8>}, {pipeline_mode = #tpu.pipeline_mode<synchronous>, transform_indices = @transform_1, window_bounds = array<i64: 8, 128>}, {pipeline_mode = #tpu.pipeline_mode<synchronous>, transform_indices = @transform_2, window_bounds = array<i64: 128, 384>}, {transform_indices = @transform_3, window_bounds = array<i64: 1, 128>}]} {
    %c0 = arith.constant 0 : index
    %c0_0 = arith.constant 0 : index
    %0 = vector.load %arg2[%c0, %c0_0] : memref<8x128xf32, #tpu.memory_space<vmem>>, vector<8x128xf32>
    %c0_1 = arith.constant 0 : index
    %c0_2 = arith.constant 0 : index
    %1 = vector.load %arg3[%c0_1, %c0_2] : memref<128x384xbf16, #tpu.memory_space<vmem>>, vector<128x384xbf16>
    %c8_i32 = arith.constant 8 : i32
    %2 = arith.muli %arg0, %c8_i32 : i32
    %cst = arith.constant 0.000000e+00 : f32
    %cst_3 = arith.constant 0.000000e+00 : f32
    %cst_4 = arith.constant 0.000000e+00 : f32
    %c0_i32 = arith.constant 0 : i32
    %c8_i32_5 = arith.constant 8 : i32
    %3 = arith.muli %c0_i32, %c8_i32_5 : i32
    %4 = arith.index_cast %3 : i32 to index
    %c0_6 = arith.constant 0 : index
    %5 = vector.load %arg1[%4, %c0_6] : memref<8x8xf32, #tpu.memory_space<vmem>>, vector<8x8xf32>
    %cst_7 = arith.constant dense<0.000000e+00> : vector<8x128xf32>
    %6 = tpu.matmul %5, %0, %cst_7 {dimension_numbers = #tpu.dot_dimension_numbers<[1], [0], [0], [1], [0, 0, 1, 1], [], []>} : vector<8x8xf32>, vector<8x128xf32>, vector<8x128xf32> -> vector<8x128xf32>
    %cst_8 = arith.constant 0.000000e+00 : f32
    %7 = vector.broadcast %cst_8 : f32 to vector<8x128xf32>
    %8 = arith.minimumf %6, %7 : vector<8x128xf32>
    %9 = math.exp %8 : vector<8x128xf32>
    %10 = arith.truncf %9 : vector<8x128xf32> to vector<8x128xbf16>
    %cst_9 = arith.constant dense<0.000000e+00> : vector<8x384xf32>
    %11 = tpu.matmul %10, %1, %cst_9 {dimension_numbers = #tpu.dot_dimension_numbers<[1], [0], [0], [1], [0, 0, 1, 1], [], []>} : vector<8x128xbf16>, vector<128x384xbf16>, vector<8x384xf32> -> vector<8x384xf32>
    %12 = vector.extract_strided_slice %11 {offsets = [0, 0], sizes = [8, 128], strides = [1, 1]} : vector<8x384xf32> to vector<8x128xf32>
    %13 = vector.extract_strided_slice %11 {offsets = [0, 128], sizes = [8, 128], strides = [1, 1]} : vector<8x384xf32> to vector<8x128xf32>
    %14 = vector.extract_strided_slice %11 {offsets = [0, 256], sizes = [8, 1], strides = [1, 1]} : vector<8x384xf32> to vector<8x1xf32>
    %15 = vector.extract_strided_slice %5 {offsets = [0, 4], sizes = [8, 1], strides = [1, 1]} : vector<8x8xf32> to vector<8x1xf32>
    %16 = arith.mulf %12, %12 : vector<8x128xf32>
    %cst_10 = arith.constant dense<0.000000e+00> : vector<8xf32>
    %17 = vector.multi_reduction <add>, %16, %cst_10 [1] : vector<8x128xf32> to vector<8xf32>
    %18 = vector.shape_cast %17 : vector<8xf32> to vector<8x1xf32>
    %19 = arith.mulf %13, %13 : vector<8x128xf32>
    %cst_11 = arith.constant dense<0.000000e+00> : vector<8xf32>
    %20 = vector.multi_reduction <add>, %19, %cst_11 [1] : vector<8x128xf32> to vector<8xf32>
    %21 = vector.shape_cast %20 : vector<8xf32> to vector<8x1xf32>
    %22 = arith.addi %2, %3 : i32
    %23 = tpu.iota {dimensions = array<i32: 0>} : vector<8x1xi32>
    %24 = vector.broadcast %22 : i32 to vector<8x1xi32>
    %25 = arith.addi %24, %23 : vector<8x1xi32>
    %c16_i32 = arith.constant 16 : i32
    %26 = vector.broadcast %c16_i32 : i32 to vector<8x1xi32>
    %27 = arith.cmpi slt, %25, %26 : vector<8x1xi32>
    %28 = arith.extui %27 : vector<8x1xi1> to vector<8x1xi32>
    %29 = arith.sitofp %28 : vector<8x1xi32> to vector<8x1xf32>
    %30 = vector.shape_cast %29 : vector<8x1xf32> to vector<1x8x1xf32>
    %cst_12 = arith.constant dense<0.000000e+00> : vector<1xf32>
    %31 = vector.multi_reduction <add>, %30, %cst_12 [1, 2] : vector<1x8x1xf32> to vector<1xf32>
    %32 = vector.shape_cast %31 : vector<1xf32> to vector<1x1x1xf32>
    %33 = vector.extract %32[0, 0, 0] : f32 from vector<1x1x1xf32>
    %34 = arith.subf %15, %14 : vector<8x1xf32>
    %35 = arith.mulf %34, %34 : vector<8x1xf32>
    %36 = arith.mulf %29, %35 : vector<8x1xf32>
    %37 = vector.shape_cast %36 : vector<8x1xf32> to vector<1x8x1xf32>
    %cst_13 = arith.constant dense<0.000000e+00> : vector<1xf32>
    %38 = vector.multi_reduction <add>, %37, %cst_13 [1, 2] : vector<1x8x1xf32> to vector<1xf32>
    %39 = vector.shape_cast %38 : vector<1xf32> to vector<1x1x1xf32>
    %40 = vector.extract %39[0, 0, 0] : f32 from vector<1x1x1xf32>
    %cst_14 = arith.constant 1.000000e+00 : f32
    %41 = arith.mulf %33, %cst_14 : f32
    %42 = arith.subf %21, %18 : vector<8x1xf32>
    %43 = arith.mulf %29, %42 : vector<8x1xf32>
    %44 = vector.shape_cast %43 : vector<8x1xf32> to vector<1x8x1xf32>
    %cst_15 = arith.constant dense<0.000000e+00> : vector<1xf32>
    %45 = vector.multi_reduction <add>, %44, %cst_15 [1, 2] : vector<1x8x1xf32> to vector<1xf32>
    %46 = vector.shape_cast %45 : vector<1xf32> to vector<1x1x1xf32>
    %47 = vector.extract %46[0, 0, 0] : f32 from vector<1x1x1xf32>
    %48 = arith.addf %41, %47 : f32
    %49 = arith.addf %cst, %33 : f32
    %50 = arith.addf %cst_3, %40 : f32
    %51 = arith.addf %cst_4, %48 : f32
    %c1_i32 = arith.constant 1 : i32
    %cst_16 = arith.constant 1.38364661 : f32
    %52 = arith.mulf %49, %cst_16 : f32
    %53 = arith.addf %50, %51 : f32
    %cst_17 = arith.constant 5.000000e-01 : f32
    %54 = arith.mulf %cst_17, %53 : f32
    %cst_18 = arith.constant 0.00999999977 : f32
    %55 = arith.divf %54, %cst_18 : f32
    %56 = arith.subf %52, %55 : f32
    %57 = vector.broadcast %56 : f32 to vector<1x128xf32>
    %c0_19 = arith.constant 0 : index
    %c0_20 = arith.constant 0 : index
    %58 = vector.load %arg4[%c0_19, %c0_20] : memref<1x128xf32, #tpu.memory_space<vmem>>, vector<1x128xf32>
    tpu.vector_store %arg4[%c0_19, %c0_20], %57 {strides = array<i32>} : memref<1x128xf32, #tpu.memory_space<vmem>>, vector<1x128xf32>,
    return
  }
  func.func @transform_0(%arg0: i32) -> (i32, i32) {
    %c0_i32 = arith.constant 0 : i32
    %c0_i32_0 = arith.constant 0 : i32
    return %arg0, %c0_i32 : i32, i32
  }
  func.func @transform_1(%arg0: i32) -> (i32, i32) {
    %c0_i32 = arith.constant 0 : i32
    %c0_i32_0 = arith.constant 0 : i32
    %c0_i32_1 = arith.constant 0 : i32
    return %c0_i32, %c0_i32_0 : i32, i32
  }
  func.func @transform_2(%arg0: i32) -> (i32, i32) {
    %c0_i32 = arith.constant 0 : i32
    %c0_i32_0 = arith.constant 0 : i32
    %c0_i32_1 = arith.constant 0 : i32
    return %c0_i32, %c0_i32_0 : i32, i32
  }
  func.func @transform_3(%arg0: i32) -> (i32, i32) {
    %c0_i32 = arith.constant 0 : i32
    %c0_i32_0 = arith.constant 0 : i32
    return %c0_i32, %arg0 : i32, i32
  }
}

</mosaic_0001>

<llo_original>
// kernel: custom-call.4
$region0: #{custom-call.4}
  %s0 = inlined_call_operand.vmem [shape: f32[8,8], index: 0, kind: input, shape index: {}]
  %s1 = inlined_call_operand.vmem [shape: f32[8,8], index: 1, kind: output, shape index: {}]
  $region1: #{custom-call.4} parent=0
    #allocation0 [shape = 'u8[4096]{0}', space=vmem, size = 0x1000, scoped, tag = 'operand span for operand 0']
    #allocation1 [shape = 'u8[4096]{0}', space=vmem, size = 0x1000, scoped, tag = 'operand span for operand 1']
    // Predicated region
    $region2: #{custom-call.4} parent=1 // pred_check
      _
    $region3: #{custom-call.4} parent=1 // pred_check_branch
      %3 = sbr.rel (0) target = $region5
    $region4: #{custom-call.4} parent=1 // pred_region
      // Predicated region
      $region6: #{custom-call.4} parent=4 // pred_check
        _
      $region7: #{custom-call.4} parent=4 // pred_check_branch
        %5 = sbr.rel (0) target = $region9
      $region8: #{custom-call.4} parent=4 // pred_region
        // Predicated region
        $region21: #{custom-call.4} parent=8 // pred_check
          _
        $region22: #{custom-call.4} parent=8 // pred_check_branch
          %20 = sbr.rel (0) target = $region24
        $region23: #{custom-call.4} parent=8 // pred_region
          loop: start=0, step=1, limit=1
          $region25: #{custom-call.4} parent=23 // loop_pre_header
            _
          $region26: #{custom-call.4} parent=23 // loop_header
            %s22 = sphi 0, %s26
            %p23 = scmp.ge.s32.totalorder %s22, 1
            %s27 = sphi %s0, %s0
            %s28 = sphi [#allocation0], [#allocation0]
          $region27: #{custom-call.4} parent=23 // loop_header_branch
            %25 = sbr.rel (%p23) target = $region31
          $region28: #{custom-call.4} parent=23 // loop_body
            %v29 = vld [vmem:[%s27] sm:$0xff]
            %30 = vst [vmem:[%s28] sm:$0xff] %v29
          $region29: #{custom-call.4} parent=23 // loop_footer
            %s26 = sadd.s32 1, %s22
          $region30: #{custom-call.4} parent=23 // loop_footer_branch
            %21 = sbr.rel target = $region26
          $region31: #{custom-call.4} parent=23 // loop_exit
            _
        $region24: #{custom-call.4} parent=8 // pred_fallthru
          _
        // Predicated region
        $region32: #{custom-call.4} parent=8 // pred_check
          _
        $region33: #{custom-call.4} parent=8 // pred_check_branch
          %32 = sbr.rel target = $region35
        $region34: #{custom-call.4} parent=8 // pred_region
          _
        $region35: #{custom-call.4} parent=8 // pred_fallthru
          _
      $region9: #{custom-call.4} parent=4 // pred_fallthru
        _
      // Predicated region
      $region10: #{custom-call.4} parent=4 // pred_check
        _
      $region11: #{custom-call.4} parent=4 // pred_check_branch
        %7 = sbr.rel target = $region13
      $region12: #{custom-call.4} parent=4 // pred_region
        loop: start=0, step=1, limit=1
        $region14: #{custom-call.4} parent=12 // loop_pre_header
          _
        $region15: #{custom-call.4} parent=12 // loop_header
          %s10 = sphi 0, %s14
          %p11 = scmp.ge.s32.totalorder %s10, 1
          %s15 = sphi %s0, %s0
          %s16 = sphi [#allocation0], [#allocation0]
        $region16: #{custom-call.4} parent=12 // loop_header_branch
          %13 = sbr.rel (%p11) target = $region20
        $region17: #{custom-call.4} parent=12 // loop_body
          %v17 = vld [vmem:[%s15] sm:$0xff]
          %18 = vst [vmem:[%s16] sm:$0xff] %v17
        $region18: #{custom-call.4} parent=12 // loop_footer
          %s14 = sadd.s32 1, %s10
        $region19: #{custom-call.4} parent=12 // loop_footer_branch
          %9 = sbr.rel target = $region15
        $region20: #{custom-call.4} parent=12 // loop_exit
          _
      $region13: #{custom-call.4} parent=4 // pred_fallthru
        _
    $region5: #{custom-call.4} parent=1 // pred_fallthru
      _
    %33 = vnop
    %34 = vst [vmem:[#allocation1] sm:$0xff] 0.0
    %vm35 = vcmask 7168
    %v36 = vld [vmem:[#allocation1] ss:$0 sm:$0xff]
    %v37 = vld [vmem:[#allocation0] ss:$0 sm:$0xff]
    %v38 = vmul.f32 %v36, %v36
    %39 = vadd.xlane.f32.xlu0 %v38
    %v40 = vpop.xlane.xlu0 %39
    %v41 = vsub.f32 %v37, %v40
    %v42 = vrsqrt.pop %v41
    %v43 = vld [vmem:[#allocation0] sm:$0xff]
    %v44 = vld [vmem:[#allocation1] sm:$0xff]
    %v45 = vmul.f32 %v44, %v36
    %46 = vadd.xlane.f32.xlu0 %v45
    %v47 = vpop.xlane.xlu0 %46
    %v48 = vsub.f32 %v43, %v47
    %v49 = vmul.f32 %v48, %v42
    %v50 = vsel %vm35, %v49, 0.0
    %v51 = vadd.f32 %v44, %v50
    %52 = vst [vmem:[#allocation1] sm:$0xff] %v51
    %vm53 = vcmask 15368
    %s54 = scalar_lea.vmem [#allocation1], 1
    %v55 = vld [vmem:[%s54] ss:$0 sm:$0xff]
    %s56 = scalar_lea.vmem [#allocation0], 1
    %v57 = vld [vmem:[%s56] ss:$0 sm:$0xff]
    %v58 = vmul.f32 %v55, %v55
    %59 = vadd.xlane.f32.xlu0 %v58
    %v60 = vpop.xlane.xlu0 %59
    %v61 = vsub.f32 %v57, %v60
    %v62 = vrsqrt.pop %v61
    %v63 = vld [vmem:[#allocation0] sm:$0xff]
    %v64 = vld [vmem:[#allocation1] sm:$0xff]
    %v65 = vmul.f32 %v64, %v55
    %66 = vadd.xlane.f32.xlu0 %v65
    %v67 = vpop.xlane.xlu0 %66
    %v68 = vsub.f32 %v63, %v67
    %v69 = vmul.f32 %v68, %v62
    %vm70 = vcmask 1047553
    %vm71 = vmand %vm53, %vm70
    %v72 = vsel %vm71, %v69, 0.0
    %v73 = vadd.f32 %v64, %v72
    %74 = vst [vmem:[#allocation1] sm:$0xff] %v73
    %vm75 = vcmask 23568
    %s76 = scalar_lea.vmem [#allocation1], 2
    %v77 = vld [vmem:[%s76] ss:$0 sm:$0xff]
    %s78 = scalar_lea.vmem [#allocation0], 2
    %v79 = vld [vmem:[%s78] ss:$0 sm:$0xff]
    %v80 = vmul.f32 %v77, %v77
    %81 = vadd.xlane.f32.xlu0 %v80
    %v82 = vpop.xlane.xlu0 %81
    %v83 = vsub.f32 %v79, %v82
    %v84 = vrsqrt.pop %v83
    %v85 = vld [vmem:[#allocation0] sm:$0xff]
    %v86 = vld [vmem:[#allocation1] sm:$0xff]
    %v87 = vmul.f32 %v86, %v77
    %88 = vadd.xlane.f32.xlu0 %v87
    %v89 = vpop.xlane.xlu0 %88
    %v90 = vsub.f32 %v85, %v89
    %v91 = vmul.f32 %v90, %v84
    %vm92 = vcmask 1047554
    %vm93 = vmand %vm75, %vm92
    %v94 = vsel %vm93, %v91, 0.0
    %v95 = vadd.f32 %v86, %v94
    %96 = vst [vmem:[#allocation1] sm:$0xff] %v95
    %vm97 = vcmask 31768
    %s98 = scalar_lea.vmem [#allocation1], 3
    %v99 = vld [vmem:[%s98] ss:$0 sm:$0xff]
    %s100 = scalar_lea.vmem [#allocation0], 3
    %v101 = vld [vmem:[%s100] ss:$0 sm:$0xff]
    %v102 = vmul.f32 %v99, %v99
    %103 = vadd.xlane.f32.xlu0 %v102
    %v104 = vpop.xlane.xlu0 %103
    %v105 = vsub.f32 %v101, %v104
    %v106 = vrsqrt.pop %v105
    %v107 = vld [vmem:[#allocation0] sm:$0xff]
    %v108 = vld [vmem:[#allocation1] sm:$0xff]
    %v109 = vmul.f32 %v108, %v99
    %110 = vadd.xlane.f32.xlu0 %v109
    %v111 = vpop.xlane.xlu0 %110
    %v112 = vsub.f32 %v107, %v111
    %v113 = vmul.f32 %v112, %v106
    %vm114 = vcmask 1047555
    %vm115 = vmand %vm97, %vm114
    %v116 = vsel %vm115, %v113, 0.0
    %v117 = vadd.f32 %v108, %v116
    %118 = vst [vmem:[#allocation1] sm:$0xff] %v117
    %vm119 = vcmask 39968
    %s120 = scalar_lea.vmem [#allocation1], 4
    %v121 = vld [vmem:[%s120] ss:$0 sm:$0xff]
    %s122 = scalar_lea.vmem [#allocation0], 4
    %v123 = vld [vmem:[%s122] ss:$0 sm:$0xff]
    %v124 = vmul.f32 %v121, %v121
    %125 = vadd.xlane.f32.xlu0 %v124
    %v126 = vpop.xlane.xlu0 %125
    %v127 = vsub.f32 %v123, %v126
    %v128 = vrsqrt.pop %v127
    %v129 = vld [vmem:[#allocation0] sm:$0xff]
    %v130 = vld [vmem:[#allocation1] sm:$0xff]
    %v131 = vmul.f32 %v130, %v121
    %132 = vadd.xlane.f32.xlu0 %v131
    %v133 = vpop.xlane.xlu0 %132
    %v134 = vsub.f32 %v129, %v133
    %v135 = vmul.f32 %v134, %v128
    %vm136 = vcmask 1047556
    %vm137 = vmand %vm119, %vm136
    %v138 = vsel %vm137, %v135, 0.0
    %v139 = vadd.f32 %v130, %v138
    %140 = vst [vmem:[#allocation1] sm:$0xff] %v139
    %vm141 = vcmask 48168
    %s142 = scalar_lea.vmem [#allocation1], 5
    %v143 = vld [vmem:[%s142] ss:$0 sm:$0xff]
    %s144 = scalar_lea.vmem [#allocation0], 5
    %v145 = vld [vmem:[%s144] ss:$0 sm:$0xff]
    %v146 = vmul.f32 %v143, %v143
    %147 = vadd.xlane.f32.xlu0 %v146
    %v148 = vpop.xlane.xlu0 %147
    %v149 = vsub.f32 %v145, %v148
    %v150 = vrsqrt.pop %v149
    %v151 = vld [vmem:[#allocation0] sm:$0xff]
    %v152 = vld [vmem:[#allocation1] sm:$0xff]
    %v153 = vmul.f32 %v152, %v143
    %154 = vadd.xlane.f32.xlu0 %v153
    %v155 = vpop.xlane.xlu0 %154
    %v156 = vsub.f32 %v151, %v155
    %v157 = vmul.f32 %v156, %v150
    %vm158 = vcmask 1047557
    %vm159 = vmand %vm141, %vm158
    %v160 = vsel %vm159, %v157, 0.0
    %v161 = vadd.f32 %v152, %v160
    %162 = vst [vmem:[#allocation1] sm:$0xff] %v161
    %vm163 = vcmask 56368
    %s164 = scalar_lea.vmem [#allocation1], 6
    %v165 = vld [vmem:[%s164] ss:$0 sm:$0xff]
    %s166 = scalar_lea.vmem [#allocation0], 6
    %v167 = vld [vmem:[%s166] ss:$0 sm:$0xff]
    %v168 = vmul.f32 %v165, %v165
    %169 = vadd.xlane.f32.xlu0 %v168
    %v170 = vpop.xlane.xlu0 %169
    %v171 = vsub.f32 %v167, %v170
    %v172 = vrsqrt.pop %v171
    %v173 = vld [vmem:[#allocation0] sm:$0xff]
    %v174 = vld [vmem:[#allocation1] sm:$0xff]
    %v175 = vmul.f32 %v174, %v165
    %176 = vadd.xlane.f32.xlu0 %v175
    %v177 = vpop.xlane.xlu0 %176
    %v178 = vsub.f32 %v173, %v177
    %v179 = vmul.f32 %v178, %v172
    %vm180 = vcmask 1047558
    %vm181 = vmand %vm163, %vm180
    %v182 = vsel %vm181, %v179, 0.0
    %v183 = vadd.f32 %v174, %v182
    %184 = vst [vmem:[#allocation1] sm:$0xff] %v183
    %vm185 = vcmask 64568
    %s186 = scalar_lea.vmem [#allocation1], 7
    %v187 = vld [vmem:[%s186] ss:$0 sm:$0xff]
    %s188 = scalar_lea.vmem [#allocation0], 7
    %v189 = vld [vmem:[%s188] ss:$0 sm:$0xff]
    %v190 = vmul.f32 %v187, %v187
    %191 = vadd.xlane.f32.xlu0 %v190
    %v192 = vpop.xlane.xlu0 %191
    %v193 = vsub.f32 %v189, %v192
    %v194 = vrsqrt.pop %v193
    %v195 = vld [vmem:[#allocation0] sm:$0xff]
    %v196 = vld [vmem:[#allocation1] sm:$0xff]
    %v197 = vmul.f32 %v196, %v187
    %198 = vadd.xlane.f32.xlu0 %v197
    %v199 = vpop.xlane.xlu0 %198
    %v200 = vsub.f32 %v195, %v199
    %v201 = vmul.f32 %v200, %v194
    %vm202 = vcmask 1047559
    %vm203 = vmand %vm185, %vm202
    %v204 = vsel %vm203, %v201, 0.0
    %v205 = vadd.f32 %v196, %v204
    %206 = vst [vmem:[#allocation1] sm:$0xff] %v205
    // Predicated region
    $region36: #{custom-call.4} parent=1 // pred_check
      _
    $region37: #{custom-call.4} parent=1 // pred_check_branch
      %208 = sbr.rel (0) target = $region39
    $region38: #{custom-call.4} parent=1 // pred_region
      // Predicated region
      $region40: #{custom-call.4} parent=38 // pred_check
        _
      $region41: #{custom-call.4} parent=38 // pred_check_branch
        %210 = sbr.rel (0) target = $region43
      $region42: #{custom-call.4} parent=38 // pred_region
        // Predicated region
        $region55: #{custom-call.4} parent=42 // pred_check
          _
        $region56: #{custom-call.4} parent=42 // pred_check_branch
          %225 = sbr.rel (0) target = $region58
        $region57: #{custom-call.4} parent=42 // pred_region
          loop: start=0, step=1, limit=1
          $region59: #{custom-call.4} parent=57 // loop_pre_header
            _
          $region60: #{custom-call.4} parent=57 // loop_header
            %s227 = sphi 0, %s231
            %p228 = scmp.ge.s32.totalorder %s227, 1
            %s232 = sphi [#allocation1], [#allocation1]
            %s233 = sphi %s1, %s1
          $region61: #{custom-call.4} parent=57 // loop_header_branch
            %230 = sbr.rel (%p228) target = $region65
          $region62: #{custom-call.4} parent=57 // loop_body
            %v234 = vld [vmem:[%s232] sm:$0xff]
            %235 = vst [vmem:[%s233] sm:$0xff] %v234
          $region63: #{custom-call.4} parent=57 // loop_footer
            %s231 = sadd.s32 1, %s227
          $region64: #{custom-call.4} parent=57 // loop_footer_branch
            %226 = sbr.rel target = $region60
          $region65: #{custom-call.4} parent=57 // loop_exit
            _
        $region58: #{custom-call.4} parent=42 // pred_fallthru
          _
        // Predicated region
        $region66: #{custom-call.4} parent=42 // pred_check
          _
        $region67: #{custom-call.4} parent=42 // pred_check_branch
          %237 = sbr.rel target = $region69
        $region68: #{custom-call.4} parent=42 // pred_region
          _
        $region69: #{custom-call.4} parent=42 // pred_fallthru
          _
      $region43: #{custom-call.4} parent=38 // pred_fallthru
        _
      // Predicated region
      $region44: #{custom-call.4} parent=38 // pred_check
        _
      $region45: #{custom-call.4} parent=38 // pred_check_branch
        %212 = sbr.rel target = $region47
      $region46: #{custom-call.4} parent=38 // pred_region
        loop: start=0, step=1, limit=1
        $region48: #{custom-call.4} parent=46 // loop_pre_header
          _
        $region49: #{custom-call.4} parent=46 // loop_header
          %s215 = sphi 0, %s219
          %p216 = scmp.ge.s32.totalorder %s215, 1
          %s220 = sphi [#allocation1], [#allocation1]
          %s221 = sphi %s1, %s1
        $region50: #{custom-call.4} parent=46 // loop_header_branch
          %218 = sbr.rel (%p216) target = $region54
        $region51: #{custom-call.4} parent=46 // loop_body
          %v222 = vld [vmem:[%s220] sm:$0xff]
          %223 = vst [vmem:[%s221] sm:$0xff] %v222
        $region52: #{custom-call.4} parent=46 // loop_footer
          %s219 = sadd.s32 1, %s215
        $region53: #{custom-call.4} parent=46 // loop_footer_branch
          %214 = sbr.rel target = $region49
        $region54: #{custom-call.4} parent=46 // loop_exit
          _
      $region47: #{custom-call.4} parent=38 // pred_fallthru
        _
    $region39: #{custom-call.4} parent=1 // pred_fallthru
      _
    %238 = vnop

// kernel: custom-call.5
$region0: #{custom-call.5}
  %s0 = inlined_call_operand.vmem [shape: f32[1,8,8], index: 0, kind: input, shape index: {}]
  %s1 = inlined_call_operand.vmem [shape: f32[1,8,8], index: 1, kind: output, shape index: {}]
  $region1: #{custom-call.5} parent=0
    #allocation0 [shape = 'u8[4096]{0}', space=vmem, size = 0x1000, scoped, tag = 'operand span for operand 0']
    #allocation1 [shape = 'u8[4096]{0}', space=vmem, size = 0x1000, scoped, tag = 'operand span for operand 1']
    #allocation2 [shape = 'f32[8,8]{1,0}', space=vmem, size = 0x1000, scoped, tag = 'rescaled input a']
    // Predicated region
    $region2: #{custom-call.5} parent=1 // pred_check
      _
    $region3: #{custom-call.5} parent=1 // pred_check_branch
      %3 = sbr.rel (0) target = $region5
    $region4: #{custom-call.5} parent=1 // pred_region
      // Predicated region
      $region6: #{custom-call.5} parent=4 // pred_check
        _
      $region7: #{custom-call.5} parent=4 // pred_check_branch
        %5 = sbr.rel (0) target = $region9
      $region8: #{custom-call.5} parent=4 // pred_region
        // Predicated region
        $region21: #{custom-call.5} parent=8 // pred_check
          _
        $region22: #{custom-call.5} parent=8 // pred_check_branch
          %20 = sbr.rel (0) target = $region24
        $region23: #{custom-call.5} parent=8 // pred_region
          loop: start=0, step=1, limit=1
          $region25: #{custom-call.5} parent=23 // loop_pre_header
            _
          $region26: #{custom-call.5} parent=23 // loop_header
            %s22 = sphi 0, %s26
            %p23 = scmp.ge.s32.totalorder %s22, 1
            %s27 = sphi %s0, %s0
            %s28 = sphi [#allocation0], [#allocation0]
          $region27: #{custom-call.5} parent=23 // loop_header_branch
            %25 = sbr.rel (%p23) target = $region31
          $region28: #{custom-call.5} parent=23 // loop_body
            %v29 = vld [vmem:[%s27] sm:$0xff]
            %30 = vst [vmem:[%s28] sm:$0xff] %v29
          $region29: #{custom-call.5} parent=23 // loop_footer
            %s26 = sadd.s32 1, %s22
          $region30: #{custom-call.5} parent=23 // loop_footer_branch
            %21 = sbr.rel target = $region26
          $region31: #{custom-call.5} parent=23 // loop_exit
            _
        $region24: #{custom-call.5} parent=8 // pred_fallthru
          _
        // Predicated region
        $region32: #{custom-call.5} parent=8 // pred_check
          _
        $region33: #{custom-call.5} parent=8 // pred_check_branch
          %32 = sbr.rel target = $region35
        $region34: #{custom-call.5} parent=8 // pred_region
          _
        $region35: #{custom-call.5} parent=8 // pred_fallthru
          _
      $region9: #{custom-call.5} parent=4 // pred_fallthru
        _
      // Predicated region
      $region10: #{custom-call.5} parent=4 // pred_check
        _
      $region11: #{custom-call.5} parent=4 // pred_check_branch
        %7 = sbr.rel target = $region13
      $region12: #{custom-call.5} parent=4 // pred_region
        loop: start=0, step=1, limit=1
        $region14: #{custom-call.5} parent=12 // loop_pre_header
          _
        $region15: #{custom-call.5} parent=12 // loop_header
          %s10 = sphi 0, %s14
          %p11 = scmp.ge.s32.totalorder %s10, 1
          %s15 = sphi %s0, %s0
          %s16 = sphi [#allocation0], [#allocation0]
        $region16: #{custom-call.5} parent=12 // loop_header_branch
          %13 = sbr.rel (%p11) target = $region20
        $region17: #{custom-call.5} parent=12 // loop_body
          %v17 = vld [vmem:[%s15] sm:$0xff]
          %18 = vst [vmem:[%s16] sm:$0xff] %v17
        $region18: #{custom-call.5} parent=12 // loop_footer
          %s14 = sadd.s32 1, %s10
        $region19: #{custom-call.5} parent=12 // loop_footer_branch
          %9 = sbr.rel target = $region15
        $region20: #{custom-call.5} parent=12 // loop_exit
          _
      $region13: #{custom-call.5} parent=4 // pred_fallthru
        _
    $region5: #{custom-call.5} parent=1 // pred_fallthru
      _
    %33 = vnop
    %v34 = vlaneseq
    %v35 = vand.u32 %v34, 127
    %vm36 = vcmp.lt.s32.totalorder %v35, 8
    %v37 = vlaneseq
    %v38 = vshrl.u32 %v37, 7
    %vm40 = vcmp.eq.s32.totalorder %v38, %v35
    %v41 = vld [vmem:[#allocation0] sm:$0xff]
    %v42 = vsel %vm40, %v41, 0.0
    %43 = vadd.xlane.f32.xlu0 %v42
    %v44 = vpop.xlane.xlu0 %43
    %vm45 = vcmp.ge.s32.totalorder %v38, %v35
    %vm46 = vmand %vm45, %vm36
    %v47 = vsel %vm46, %v41, 0.0
    %v48 = vrcp.pop %v44
    %v49 = vmul.f32 %v47, %v48
    %50 = vst [vmem:[#allocation2] sm:$0xff] %v49
    %v51 = vlaneseq
    %v52 = vand.u32 %v51, 127
    %v53 = vlaneseq
    %v54 = vshrl.u32 %v53, 7
    %vm56 = vcmp.eq.s32.totalorder %v52, %v54
    %v57 = vlaneseq
    %v58 = vand.u32 %v57, 127
    %vm59 = vcmp.eq.s32.totalorder %v58, 0
    %v60 = vsel %vm59, 1.0, -1.0
    %v61 = vsel %vm56, %v60, 0.0
    %s62 = scalar_lea.vmem [#allocation2], 1
    %v63 = vld [vmem:[%s62] ss:$0 sm:$0xff]
    %v64 = vxor.u32 %v63, 2147483648
    %v65 = vlaneseq
    %v66 = vand.u32 %v65, 127
    %vm67 = vcmp.eq.s32.totalorder %v66, 1
    %v68 = vmul.f32 %v64, %v61
    %69 = vadd.xlane.f32.xlu0 %v68
    %v70 = vpop.xlane.xlu0 %69
    %v71 = vsel %vm67, %v70, %v61
    %s72 = scalar_lea.vmem [#allocation2], 2
    %v73 = vld [vmem:[%s72] ss:$0 sm:$0xff]
    %v74 = vxor.u32 %v73, 2147483648
    %v75 = vlaneseq
    %v76 = vand.u32 %v75, 127
    %vm77 = vcmp.eq.s32.totalorder %v76, 2
    %v78 = vmul.f32 %v74, %v71
    %79 = vadd.xlane.f32.xlu0 %v78
    %v80 = vpop.xlane.xlu0 %79
    %v81 = vsel %vm77, %v80, %v71
    %s82 = scalar_lea.vmem [#allocation2], 3
    %v83 = vld [vmem:[%s82] ss:$0 sm:$0xff]
    %v84 = vxor.u32 %v83, 2147483648
    %v85 = vlaneseq
    %v86 = vand.u32 %v85, 127
    %vm87 = vcmp.eq.s32.totalorder %v86, 3
    %v88 = vmul.f32 %v84, %v81
    %89 = vadd.xlane.f32.xlu0 %v88
    %v90 = vpop.xlane.xlu0 %89
    %v91 = vsel %vm87, %v90, %v81
    %s92 = scalar_lea.vmem [#allocation2], 4
    %v93 = vld [vmem:[%s92] ss:$0 sm:$0xff]
    %v94 = vxor.u32 %v93, 2147483648
    %v95 = vlaneseq
    %v96 = vand.u32 %v95, 127
    %vm97 = vcmp.eq.s32.totalorder %v96, 4
    %v98 = vmul.f32 %v94, %v91
    %99 = vadd.xlane.f32.xlu0 %v98
    %v100 = vpop.xlane.xlu0 %99
    %v101 = vsel %vm97, %v100, %v91
    %s102 = scalar_lea.vmem [#allocation2], 5
    %v103 = vld [vmem:[%s102] ss:$0 sm:$0xff]
    %v104 = vxor.u32 %v103, 2147483648
    %v105 = vlaneseq
    %v106 = vand.u32 %v105, 127
    %vm107 = vcmp.eq.s32.totalorder %v106, 5
    %v108 = vmul.f32 %v104, %v101
    %109 = vadd.xlane.f32.xlu0 %v108
    %v110 = vpop.xlane.xlu0 %109
    %v111 = vsel %vm107, %v110, %v101
    %s112 = scalar_lea.vmem [#allocation2], 6
    %v113 = vld [vmem:[%s112] ss:$0 sm:$0xff]
    %v114 = vxor.u32 %v113, 2147483648
    %v115 = vlaneseq
    %v116 = vand.u32 %v115, 127
    %vm117 = vcmp.eq.s32.totalorder %v116, 6
    %v118 = vmul.f32 %v114, %v111
    %119 = vadd.xlane.f32.xlu0 %v118
    %v120 = vpop.xlane.xlu0 %119
    %v121 = vsel %vm117, %v120, %v111
    %s122 = scalar_lea.vmem [#allocation2], 7
    %v123 = vld [vmem:[%s122] ss:$0 sm:$0xff]
    %v124 = vxor.u32 %v123, 2147483648
    %v125 = vlaneseq
    %v126 = vand.u32 %v125, 127
    %vm127 = vcmp.eq.s32.totalorder %v126, 7
    %v128 = vmul.f32 %v124, %v121
    %129 = vadd.xlane.f32.xlu0 %v128
    %v130 = vpop.xlane.xlu0 %129
    %v131 = vsel %vm127, %v130, %v121
    %v132 = vrcp.pop %v44
    %v133 = vmul.f32 %v131, %v132
    %vm134 = vweird.f32 %v44
    %v135 = vsel %vm134, %v131, %v133
    %136 = vst [vmem:[#allocation1] sm:$0xff] %v135
    // Predicated region
    $region36: #{custom-call.5} parent=1 // pred_check
      _
    $region37: #{custom-call.5} parent=1 // pred_check_branch
      %138 = sbr.rel (0) target = $region39
    $region38: #{custom-call.5} parent=1 // pred_region
      // Predicated region
      $region40: #{custom-call.5} parent=38 // pred_check
        _
      $region41: #{custom-call.5} parent=38 // pred_check_branch
        %140 = sbr.rel (0) target = $region43
      $region42: #{custom-call.5} parent=38 // pred_region
        // Predicated region
        $region55: #{custom-call.5} parent=42 // pred_check
          _
        $region56: #{custom-call.5} parent=42 // pred_check_branch
          %155 = sbr.rel (0) target = $region58
        $region57: #{custom-call.5} parent=42 // pred_region
          loop: start=0, step=1, limit=1
          $region59: #{custom-call.5} parent=57 // loop_pre_header
            _
          $region60: #{custom-call.5} parent=57 // loop_header
            %s157 = sphi 0, %s161
            %p158 = scmp.ge.s32.totalorder %s157, 1
            %s162 = sphi [#allocation1], [#allocation1]
            %s163 = sphi %s1, %s1
          $region61: #{custom-call.5} parent=57 // loop_header_branch
            %160 = sbr.rel (%p158) target = $region65
          $region62: #{custom-call.5} parent=57 // loop_body
            %v164 = vld [vmem:[%s162] sm:$0xff]
            %165 = vst [vmem:[%s163] sm:$0xff] %v164
          $region63: #{custom-call.5} parent=57 // loop_footer
            %s161 = sadd.s32 1, %s157
          $region64: #{custom-call.5} parent=57 // loop_footer_branch
            %156 = sbr.rel target = $region60
          $region65: #{custom-call.5} parent=57 // loop_exit
            _
        $region58: #{custom-call.5} parent=42 // pred_fallthru
          _
        // Predicated region
        $region66: #{custom-call.5} parent=42 // pred_check
          _
        $region67: #{custom-call.5} parent=42 // pred_check_branch
          %167 = sbr.rel target = $region69
        $region68: #{custom-call.5} parent=42 // pred_region
          _
        $region69: #{custom-call.5} parent=42 // pred_fallthru
          _
      $region43: #{custom-call.5} parent=38 // pred_fallthru
        _
      // Predicated region
      $region44: #{custom-call.5} parent=38 // pred_check
        _
      $region45: #{custom-call.5} parent=38 // pred_check_branch
        %142 = sbr.rel target = $region47
      $region46: #{custom-call.5} parent=38 // pred_region
        loop: start=0, step=1, limit=1
        $region48: #{custom-call.5} parent=46 // loop_pre_header
          _
        $region49: #{custom-call.5} parent=46 // loop_header
          %s145 = sphi 0, %s149
          %p146 = scmp.ge.s32.totalorder %s145, 1
          %s150 = sphi [#allocation1], [#allocation1]
          %s151 = sphi %s1, %s1
        $region50: #{custom-call.5} parent=46 // loop_header_branch
          %148 = sbr.rel (%p146) target = $region54
        $region51: #{custom-call.5} parent=46 // loop_body
          %v152 = vld [vmem:[%s150] sm:$0xff]
          %153 = vst [vmem:[%s151] sm:$0xff] %v152
        $region52: #{custom-call.5} parent=46 // loop_footer
          %s149 = sadd.s32 1, %s145
        $region53: #{custom-call.5} parent=46 // loop_footer_branch
          %144 = sbr.rel target = $region49
        $region54: #{custom-call.5} parent=46 // loop_exit
          _
      $region47: #{custom-call.5} parent=38 // pred_fallthru
        _
    $region39: #{custom-call.5} parent=1 // pred_fallthru
      _
    %168 = vnop

// kernel: svgp_forward.1
$region0: #{svgp_forward.1}
  #allocation0 [shape = 'u32[]', space=smem, size = 0x4, offset = 0x4, fixed_abs, tag = 'smem constant byte address 0x4 - core index']
  #allocation1 [shape = 'u32[144,128]{1,0:T(1,128)}', space=vmem, size = 0x12000, scoped, tag = 'internal scratch']
  %s0 = inlined_call_operand.vmem [shape: f32[16,8], index: 0, kind: input, shape index: {}]
  %s1 = inlined_call_operand.vmem [shape: f32[8,128], index: 1, kind: input, shape index: {}]
  %s2 = inlined_call_operand.vmem [shape: bf16[128,384], index: 2, kind: input, shape index: {}]
  %s3 = inlined_call_operand.vmem [shape: f32[1,256], index: 3, kind: output, shape index: {}]
  %s4 = sld [smem:[#allocation0]]
  $region45: #{svgp_forward.1} parent=0
    _
  %s6 = ssub.s32 1, %s4
  %s7 = scalar_select 0, %s6, %s4
  loop: start=0, step=1, limit=4
  $region2: #{svgp_forward.1} parent=0 // loop_pre_header
    _
  $region3: #{svgp_forward.1} parent=0 // loop_header
    %s9 = sphi 0, %s13
    %p10 = scmp.ge.s32.totalorder %s9, 4
    %s19 = sphi 0, %s21
    %s22 = sphi 0, %s19
    %s23 = sphi 0, %s22
    %s39 = sphi 0, %s23
    %s43 = sphi 0, %s43
    %s45 = sphi 0, %s43
    %s46 = sphi 0, %s45
    %s60 = sphi 0, %s46
    %s64 = sphi 0, %s64
    %s66 = sphi 0, %s64
    %s67 = sphi 0, %s66
    %s81 = sphi 0, %s67
    %s87 = sphi 0, %s89
    %s90 = sphi 0, %s87
    %s91 = sphi 0, %s90
    %s107 = sphi 0, %s91
  $region4: #{svgp_forward.1} parent=0 // loop_header_branch
    %12 = sbr.rel (%p10) target = $region8
  $region5: #{svgp_forward.1} parent=0 // loop_body
    %s14 = ssub.s32 %s9, 1
    %s15 = ssub.s32 %s9, 2
    %s16 = sadd.s32 %s9, 1
    %s17 = ssub.s32 %s9, %s16
    %p18 = scmp.eq.s32.totalorder %s17, 0
    %s20 = sadd.s32 %s19, 1
    %s21 = scalar_select %p18, %s19, %s20
    %p24 = pneg %p18
    %p25 = scmp.eq.s32.totalorder %s9, 1
    %p26 = por %p24, %p25
    %p27 = scmp.ne.s32.totalorder %s19, %s22
    %p28 = scmp.eq.s32.totalorder %s9, 0
    %p29 = por %p27, %p28
    %p30 = scmp.ne.s32.totalorder %s19, %s22
    %p31 = scmp.eq.s32.totalorder %s14, 1
    %p32 = por %p30, %p31
    %p33 = scmp.ne.s32.totalorder %s22, %s23
    %p34 = scmp.eq.s32.totalorder %s14, 0
    %p35 = por %p33, %p34
    %p36 = scmp.ne.s32.totalorder %s22, %s23
    %p37 = scmp.eq.s32.totalorder %s15, 1
    %p38 = por %p36, %p37
    %p40 = scmp.ne.s32.totalorder %s23, %s39
    %p41 = scmp.eq.s32.totalorder %s15, 0
    %p42 = por %p40, %p41
    %s44 = sadd.s32 %s43, 1
    %p47 = scmp.eq.s32.totalorder %s9, 1
    %p48 = scmp.ne.s32.totalorder %s43, %s45
    %p49 = scmp.eq.s32.totalorder %s9, 0
    %p50 = por %p48, %p49
    %p51 = scmp.ne.s32.totalorder %s43, %s45
    %p52 = scmp.eq.s32.totalorder %s14, 1
    %p53 = por %p51, %p52
    %p54 = scmp.ne.s32.totalorder %s45, %s46
    %p55 = scmp.eq.s32.totalorder %s14, 0
    %p56 = por %p54, %p55
    %p57 = scmp.ne.s32.totalorder %s45, %s46
    %p58 = scmp.eq.s32.totalorder %s15, 1
    %p59 = por %p57, %p58
    %p61 = scmp.ne.s32.totalorder %s46, %s60
    %p62 = scmp.eq.s32.totalorder %s15, 0
    %p63 = por %p61, %p62
    %s65 = sadd.s32 %s64, 1
    %p68 = scmp.eq.s32.totalorder %s9, 1
    %p69 = scmp.ne.s32.totalorder %s64, %s66
    %p70 = scmp.eq.s32.totalorder %s9, 0
    %p71 = por %p69, %p70
    %p72 = scmp.ne.s32.totalorder %s64, %s66
    %p73 = scmp.eq.s32.totalorder %s14, 1
    %p74 = por %p72, %p73
    %p75 = scmp.ne.s32.totalorder %s66, %s67
    %p76 = scmp.eq.s32.totalorder %s14, 0
    %p77 = por %p75, %p76
    %p78 = scmp.ne.s32.totalorder %s66, %s67
    %p79 = scmp.eq.s32.totalorder %s15, 1
    %p80 = por %p78, %p79
    %p82 = scmp.ne.s32.totalorder %s67, %s81
    %p83 = scmp.eq.s32.totalorder %s15, 0
    %p84 = por %p82, %p83
    %s85 = ssub.s32 %s9, %s16
    %p86 = scmp.eq.s32.totalorder %s85, 0
    %s88 = sadd.s32 %s87, 1
    %s89 = scalar_select %p86, %s87, %s88
    %p92 = pneg %p86
    %p93 = scmp.eq.s32.totalorder %s9, 1
    %p94 = por %p92, %p93
    %p95 = scmp.ne.s32.totalorder %s87, %s90
    %p96 = scmp.eq.s32.totalorder %s9, 0
    %p97 = por %p95, %p96
    %p98 = scmp.ne.s32.totalorder %s87, %s90
    %p99 = scmp.eq.s32.totalorder %s14, 1
    %p100 = por %p98, %p99
    %p101 = scmp.ne.s32.totalorder %s90, %s91
    %p102 = scmp.eq.s32.totalorder %s14, 0
    %p103 = por %p101, %p102
    %p104 = scmp.ne.s32.totalorder %s90, %s91
    %p105 = scmp.eq.s32.totalorder %s15, 1
    %p106 = por %p104, %p105
    %p108 = scmp.ne.s32.totalorder %s91, %s107
    %p109 = scmp.eq.s32.totalorder %s15, 0
    %p110 = por %p108, %p109
    %p111 = scmp.le.s32.totalorder 1, %s9
    %p112 = scmp.lt.s32.totalorder %s9, 3
    %p113 = pnand %p111, %p112
    %p114 = pneg %p113
    // Predicated region
    $region9: #{svgp_forward.1} parent=5 // pred_check
      _
    $region10: #{svgp_forward.1} parent=5 // pred_check_branch
      %116 = sbr.rel (%p113) target = $region12
    $region11: #{svgp_forward.1} parent=5 // pred_region
      %s117 = ssub.s32 %s9, 1
      // Predicated region
      $region13: #{svgp_forward.1} parent=11 // pred_check
        %p118 = pneg %p56
      $region14: #{svgp_forward.1} parent=11 // pred_check_branch
        %120 = sbr.rel (%p118) target = $region16
      $region15: #{svgp_forward.1} parent=11 // pred_region
        _
      $region16: #{svgp_forward.1} parent=11 // pred_fallthru
        _
      // Predicated region
      $region17: #{svgp_forward.1} parent=11 // pred_check
        %p121 = pneg %p77
      $region18: #{svgp_forward.1} parent=11 // pred_check_branch
        %123 = sbr.rel (%p121) target = $region20
      $region19: #{svgp_forward.1} parent=11 // pred_region
        _
      $region20: #{svgp_forward.1} parent=11 // pred_fallthru
        _
    $region12: #{svgp_forward.1} parent=5 // pred_fallthru
      _
    %p124 = scmp.lt.s32.totalorder %s9, 2
    // Predicated region
    $region21: #{svgp_forward.1} parent=5 // pred_check
      %p125 = pneg %p124
    $region22: #{svgp_forward.1} parent=5 // pred_check_branch
      %127 = sbr.rel (%p125) target = $region24
    $region23: #{svgp_forward.1} parent=5 // pred_region
      // Predicated region
      $region25: #{svgp_forward.1} parent=23 // pred_check
        %p128 = pneg %p29
      $region26: #{svgp_forward.1} parent=23 // pred_check_branch
        %130 = sbr.rel (%p128) target = $region28
      $region27: #{svgp_forward.1} parent=23 // pred_region
        %p131 = scmp.lt.s32.totalorder %s9, 1
        %s132 = scalar_select %p131, %s9, 1
        %s133 = smul.addr %s132, 8
        %s134 = scalar_lea.vmem %s0, %s133
      $region28: #{svgp_forward.1} parent=23 // pred_fallthru
        _
    $region24: #{svgp_forward.1} parent=5 // pred_fallthru
      _
    %p135 = scmp.le.s32.totalorder 1, %s9
    %p136 = scmp.lt.s32.totalorder %s9, 3
    %p137 = pnand %p135, %p136
    %p138 = pneg %p137
    // Predicated region
    $region29: #{svgp_forward.1} parent=5 // pred_check
      _
    $region30: #{svgp_forward.1} parent=5 // pred_check_branch
      %140 = sbr.rel (%p137) target = $region32
    $region31: #{svgp_forward.1} parent=5 // pred_region
      %s141 = ssub.s32 %s9, 1
      %p142 = scmp.lt.s32.totalorder %s14, 1
      %s143 = scalar_select %p142, %s14, 1
      %s144 = smul.addr %s143, 8
      %s145 = scalar_lea.vmem %s0, %s144
      %p146 = pneg %p35
      %p147 = pneg %p32
      %p148 = pneg %p56
      %p149 = pneg %p53
      %p150 = pneg %p77
      %p151 = pneg %p74
      %p152 = pneg %p103
      %p153 = pneg %p100
      %p154 = scmp.lt.s32.totalorder %s14, 1
      %s155 = scalar_select %p154, %s14, 1
      %s156 = scalar_lea.vmem %s3, %s155
      %p157 = scmp.lt.s32.totalorder %s14, 1
      %s158 = scalar_select %p157, %s14, 1
      %s159 = smul.addr %s158, 8
      %s160 = scalar_lea.vmem %s0, %s159
      %p161 = scmp.lt.s32.totalorder %s14, 1
      %s162 = scalar_select %p161, %s14, 1
      %s163 = scalar_lea.vmem %s3, %s162
      %v165 = vld [vmem:[%s1] sm:$0xff]
      %v166 = vld [vmem:[%s2] sm:$0xff]
      %v167 = vld [vmem:[%s2 + $0x8] sm:$0xf]
      %v168 = vld [vmem:[%s2 + $0xc] sm:$0xff]
      %v169 = vld [vmem:[%s2 + $0x14] sm:$0xf]
      %v170 = vld [vmem:[%s2 + $0x18] sm:$0xff]
      %v171 = vld [vmem:[%s2 + $0x20] sm:$0xf]
      %v172 = vld [vmem:[%s2 + $0x24] sm:$0xff]
      %v173 = vld [vmem:[%s2 + $0x2c] sm:$0xf]
      %v174 = vld [vmem:[%s2 + $0x30] sm:$0xff]
      %v175 = vld [vmem:[%s2 + $0x38] sm:$0xf]
      %v176 = vld [vmem:[%s2 + $0x3c] sm:$0xff]
      %v177 = vld [vmem:[%s2 + $0x44] sm:$0xf]
      %v178 = vld [vmem:[%s2 + $0x48] sm:$0xff]
      %v179 = vld [vmem:[%s2 + $0x50] sm:$0xf]
      %v180 = vld [vmem:[%s2 + $0x54] sm:$0xff]
      %v181 = vld [vmem:[%s2 + $0x5c] sm:$0xf]
      %v182 = vld [vmem:[%s2 + $0x60] sm:$0xff]
      %v183 = vld [vmem:[%s2 + $0x68] sm:$0xf]
      %v184 = vld [vmem:[%s2 + $0x6c] sm:$0xff]
      %v185 = vld [vmem:[%s2 + $0x74] sm:$0xf]
      %v186 = vld [vmem:[%s2 + $0x78] sm:$0xff]
      %v187 = vld [vmem:[%s2 + $0x80] sm:$0xf]
      %v188 = vld [vmem:[%s2 + $0x84] sm:$0xff]
      %v189 = vld [vmem:[%s2 + $0x8c] sm:$0xf]
      %v190 = vld [vmem:[%s2 + $0x90] sm:$0xff]
      %v191 = vld [vmem:[%s2 + $0x98] sm:$0xf]
      %v192 = vld [vmem:[%s2 + $0x9c] sm:$0xff]
      %v193 = vld [vmem:[%s2 + $0xa4] sm:$0xf]
      %v194 = vld [vmem:[%s2 + $0xa8] sm:$0xff]
      %v195 = vld [vmem:[%s2 + $0xb0] sm:$0xf]
      %v196 = vld [vmem:[%s2 + $0xb4] sm:$0xff]
      %v197 = vld [vmem:[%s2 + $0xbc] sm:$0xf]
      %s198 = smul.u32 %s14, 8
      %v199 = vld [vmem:[%s160] sm:$0xff]
      %vm200 = vcmask 64512
      %v202 = vsel %vm200, %v199, 0
      %204 = vmatprep.subr.mxu0 0.0
      %205 = vmatpush1.msra.mxu0 %v165
      %206 = vmatprep.subr.mxu0 0.0
      %207 = vmatpush1.msra.mxu0 0.0
      %208 = vmatprep.subr.mxu0 0.0
      %209 = vmatpush1.msra.mxu0 0.0
      %210 = vmatprep.subr.mxu0 0.0
      %211 = vmatpush1.msra.mxu0 0.0
      %212 = vmatprep.subr.mxu0 0.0
      %213 = vmatpush1.msra.mxu0 0.0
      %214 = vmatprep.subr.mxu0 0.0
      %215 = vmatpush1.msra.mxu0 0.0
      %216 = vmatprep.subr.mxu0 0.0
      %217 = vmatpush1.msra.mxu0 0.0
      %218 = vmatprep.subr.mxu0 0.0
      %219 = vmatpush1.msra.mxu0 0.0
      %220 = vmatprep.subr.mxu0 0.0
      %221 = vmatpush1.msra.mxu0 0.0
      %222 = vmatprep.subr.mxu0 0.0
      %223 = vmatpush1.msra.mxu0 0.0
      %224 = vmatprep.subr.mxu0 0.0
      %225 = vmatpush1.msra.mxu0 0.0
      %226 = vmatprep.subr.mxu0 0.0
      %227 = vmatpush1.msra.mxu0 0.0
      %228 = vmatprep.subr.mxu0 0.0
      %229 = vmatpush1.msra.mxu0 0.0
      %230 = vmatprep.subr.mxu0 0.0
      %231 = vmatpush1.msra.mxu0 0.0
      %232 = vmatprep.subr.mxu0 0.0
      %233 = vmatpush1.msra.mxu0 0.0
      %234 = vmatprep.subr.mxu0 0.0
      %235 = vmatpush1.msra.mxu0 0.0
      %236 = vmatprep.subr.mxu0 0.0
      %237 = vmatpush1.msra.mxu0 0.0
      %238 = vmatprep.subr.mxu0 0.0
      %239 = vmatpush1.msra.mxu0 0.0
      %240 = vmatprep.subr.mxu0 0.0
      %241 = vmatpush1.msra.mxu0 0.0
      %242 = vmatprep.subr.mxu0 0.0
      %243 = vmatpush1.msra.mxu0 0.0
      %244 = vmatprep.subr.mxu0 0.0
      %245 = vmatpush1.msra.mxu0 0.0
      %246 = vmatprep.subr.mxu0 0.0
      %247 = vmatpush1.msra.mxu0 0.0
      %248 = vmatprep.subr.mxu0 0.0
      %249 = vmatpush1.msra.mxu0 0.0
      %250 = vmatprep.subr.mxu0 0.0
      %251 = vmatpush1.msra.mxu0 0.0
      %252 = vmatprep.subr.mxu0 0.0
      %253 = vmatpush1.msra.mxu0 0.0
      %254 = vmatprep.subr.mxu0 0.0
      %255 = vmatpush1.msra.mxu0 0.0
      %256 = vmatprep.subr.mxu0 0.0
      %257 = vmatpush1.msra.mxu0 0.0
      %258 = vmatprep.subr.mxu0 0.0
      %259 = vmatpush1.msra.mxu0 0.0
      %260 = vmatprep.subr.mxu0 0.0
      %261 = vmatpush1.msra.mxu0 0.0
      %262 = vmatprep.subr.mxu0 0.0
      %263 = vmatpush1.msra.mxu0 0.0
      %264 = vmatprep.subr.mxu0 0.0
      %265 = vmatpush1.msra.mxu0 0.0
      %266 = vmatprep.subr.mxu0 0.0
      %267 = vmatpush1.msra.mxu0 0.0
      %268 = vmatprep.mubr.f32.mxu0 0.0
      %269 = vmatmul.mubr.f32.gmra.mrb[0].mxu0 %v202
      %v270 = vpop.f32.mrb[0].mxu0
      %v271 = vadd.f32 0.0, %v270
      %v272 = vpop.f32.mrb[0].mxu0
      %273 = vdwg.mxu0
      %v274 = vmin.f32 %v271, 0.0
      %v275 = vmul.f32 %v274, 1.442695
      %v276 = vpow.pop %v275
      %v277 = vpack.c.bf16 %v276, %v276
      %v310 = vunpack.c.l.b16 %v166
      %v311 = vunpack.c.h.b16 %v166
      %v312 = vunpack.c.l.b16 %v167
      %v313 = vunpack.c.l.b16 %v168
      %v314 = vunpack.c.h.b16 %v168
      %v315 = vunpack.c.l.b16 %v169
      %v316 = vunpack.c.l.b16 %v170
      %v317 = vunpack.c.h.b16 %v170
      %v318 = vunpack.c.l.b16 %v171
      %v319 = vunpack.c.l.b16 %v172
      %v320 = vunpack.c.h.b16 %v172
      %v321 = vunpack.c.l.b16 %v173
      %v322 = vunpack.c.l.b16 %v174
      %v323 = vunpack.c.h.b16 %v174
      %v324 = vunpack.c.l.b16 %v175
      %v325 = vunpack.c.l.b16 %v176
      %v326 = vunpack.c.h.b16 %v176
      %v327 = vunpack.c.l.b16 %v177
      %v328 = vunpack.c.l.b16 %v178
      %v329 = vunpack.c.h.b16 %v178
      %v330 = vunpack.c.l.b16 %v179
      %v331 = vunpack.c.l.b16 %v180
      %v332 = vunpack.c.h.b16 %v180
      %v333 = vunpack.c.l.b16 %v181
      %v334 = vunpack.c.l.b16 %v182
      %v335 = vunpack.c.h.b16 %v182
      %v336 = vunpack.c.l.b16 %v183
      %v337 = vunpack.c.l.b16 %v184
      %v338 = vunpack.c.h.b16 %v184
      %v339 = vunpack.c.l.b16 %v185
      %v340 = vunpack.c.l.b16 %v186
      %v341 = vunpack.c.h.b16 %v186
      %v342 = vunpack.c.l.b16 %v187
      %v343 = vunpack.c.l.b16 %v188
      %v344 = vunpack.c.h.b16 %v188
      %v345 = vunpack.c.l.b16 %v189
      %v346 = vunpack.c.l.b16 %v190
      %v347 = vunpack.c.h.b16 %v190
      %v348 = vunpack.c.l.b16 %v191
      %v349 = vunpack.c.l.b16 %v192
      %v350 = vunpack.c.h.b16 %v192
      %v351 = vunpack.c.l.b16 %v193
      %v352 = vunpack.c.l.b16 %v194
      %v353 = vunpack.c.h.b16 %v194
      %v354 = vunpack.c.l.b16 %v195
      %v355 = vunpack.c.l.b16 %v196
      %v356 = vunpack.c.h.b16 %v196
      %v357 = vunpack.c.l.b16 %v197
      %v358 = vpack.c.b16 %v313, %v310
      %v359 = vpack.c.b16 %v314, %v311
      %v360 = vpack.c.b16 %v315, %v312
      %v361 = vpack.c.b16 %v319, %v316
      %v362 = vpack.c.b16 %v320, %v317
      %v363 = vpack.c.b16 %v321, %v318
      %v364 = vpack.c.b16 %v325, %v322
      %v365 = vpack.c.b16 %v326, %v323
      %v366 = vpack.c.b16 %v327, %v324
      %v367 = vpack.c.b16 %v331, %v328
      %v368 = vpack.c.b16 %v332, %v329
      %v369 = vpack.c.b16 %v333, %v330
      %v370 = vpack.c.b16 %v337, %v334
      %v371 = vpack.c.b16 %v338, %v335
      %v372 = vpack.c.b16 %v339, %v336
      %v373 = vpack.c.b16 %v343, %v340
      %v374 = vpack.c.b16 %v344, %v341
      %v375 = vpack.c.b16 %v345, %v342
      %v376 = vpack.c.b16 %v349, %v346
      %v377 = vpack.c.b16 %v350, %v347
      %v378 = vpack.c.b16 %v351, %v348
      %v379 = vpack.c.b16 %v355, %v352
      %v380 = vpack.c.b16 %v356, %v353
      %v381 = vpack.c.b16 %v357, %v354
      %406 = vmatprep.subr.bf16.mxu0 %v359
      %407 = vmatpush1.bf16.msra.mxu0 %v358
      %408 = vmatprep.subr.bf16.mxu0 %v362
      %409 = vmatpush1.bf16.msra.mxu0 %v361
      %410 = vmatprep.subr.bf16.mxu0 %v365
      %411 = vmatpush1.bf16.msra.mxu0 %v364
      %412 = vmatprep.subr.bf16.mxu0 %v368
      %413 = vmatpush1.bf16.msra.mxu0 %v367
      %414 = vmatprep.subr.bf16.mxu0 %v371
      %415 = vmatpush1.bf16.msra.mxu0 %v370
      %416 = vmatprep.subr.bf16.mxu0 %v374
      %417 = vmatpush1.bf16.msra.mxu0 %v373
      %418 = vmatprep.subr.bf16.mxu0 %v377
      %419 = vmatpush1.bf16.msra.mxu0 %v376
      %420 = vmatprep.subr.bf16.mxu0 %v380
      %421 = vmatpush1.bf16.msra.mxu0 %v379
      %422 = vmatprep.subr.bf16.mxu0 0
      %423 = vmatpush1.bf16.msra.mxu0 0
      %424 = vmatprep.subr.bf16.mxu0 0
      %425 = vmatpush1.bf16.msra.mxu0 0
      %426 = vmatprep.subr.bf16.mxu0 0
      %427 = vmatpush1.bf16.msra.mxu0 0
      %428 = vmatprep.subr.bf16.mxu0 0
      %429 = vmatpush1.bf16.msra.mxu0 0
      %430 = vmatprep.subr.bf16.mxu0 0
      %431 = vmatpush1.bf16.msra.mxu0 0
      %432 = vmatprep.subr.bf16.mxu0 0
      %433 = vmatpush1.bf16.msra.mxu0 0
      %434 = vmatprep.subr.bf16.mxu0 0
      %435 = vmatpush1.bf16.msra.mxu0 0
      %436 = vmatprep.subr.bf16.mxu0 0
      %437 = vmatpush1.bf16.msra.mxu0 0
      %438 = vmatprep.mubr.bf16.mxu0 0
      %439 = vmatmul.mubr.bf16.gmra.mrb[0].mxu0 %v277
      %v440 = vpop.f32.mrb[0].mxu0
      %v441 = vadd.f32 0.0, %v440
      %v442 = vpop.f32.mrb[0].mxu0
      %v443 = vadd.f32 0.0, %v442
      %v444 = vpop.f32.mrb[0].mxu0
      %v445 = vpop.f32.mrb[0].mxu0
      %446 = vdwg.mxu0
      %447 = vmatprep.subr.bf16.mxu0 0
      %448 = vmatpush1.bf16.msra.mxu0 %v360
      %449 = vmatprep.subr.bf16.mxu0 0
      %450 = vmatpush1.bf16.msra.mxu0 %v363
      %451 = vmatprep.subr.bf16.mxu0 0
      %452 = vmatpush1.bf16.msra.mxu0 %v366
      %453 = vmatprep.subr.bf16.mxu0 0
      %454 = vmatpush1.bf16.msra.mxu0 %v369
      %455 = vmatprep.subr.bf16.mxu0 0
      %456 = vmatpush1.bf16.msra.mxu0 %v372
      %457 = vmatprep.subr.bf16.mxu0 0
      %458 = vmatpush1.bf16.msra.mxu0 %v375
      %459 = vmatprep.subr.bf16.mxu0 0
      %460 = vmatpush1.bf16.msra.mxu0 %v378
      %461 = vmatprep.subr.bf16.mxu0 0
      %462 = vmatpush1.bf16.msra.mxu0 %v381
      %463 = vmatprep.subr.bf16.mxu0 0
      %464 = vmatpush1.bf16.msra.mxu0 0
      %465 = vmatprep.subr.bf16.mxu0 0
      %466 = vmatpush1.bf16.msra.mxu0 0
      %467 = vmatprep.subr.bf16.mxu0 0
      %468 = vmatpush1.bf16.msra.mxu0 0
      %469 = vmatprep.subr.bf16.mxu0 0
      %470 = vmatpush1.bf16.msra.mxu0 0
      %471 = vmatprep.subr.bf16.mxu0 0
      %472 = vmatpush1.bf16.msra.mxu0 0
      %473 = vmatprep.subr.bf16.mxu0 0
      %474 = vmatpush1.bf16.msra.mxu0 0
      %475 = vmatprep.subr.bf16.mxu0 0
      %476 = vmatpush1.bf16.msra.mxu0 0
      %477 = vmatprep.subr.bf16.mxu0 0
      %478 = vmatpush1.bf16.msra.mxu0 0
      %479 = vmatprep.mubr.bf16.mxu0 0
      %480 = vmatmul.mubr.bf16.gmra.mrb[0].mxu0 %v277
      %v481 = vpop.f32.mrb[0].mxu0
      %v482 = vadd.f32 0.0, %v481
      %v483 = vpop.f32.mrb[0].mxu0
      %v484 = vpop.f32.mrb[0].mxu0
      %v485 = vpop.f32.mrb[0].mxu0
      %486 = vdwg.mxu0
      %v487 = vmul.f32 %v441, %v441
      %488 = vadd.xlane.f32.xlu0 %v487
      %v489 = vpop.xlane.xlu0 %488
      %v490 = vmul.f32 %v443, %v443
      %491 = vadd.xlane.f32.xlu0 %v490
      %v492 = vpop.xlane.xlu0 %491
      %v493 = vlaneseq
      %v494 = vshrl.u32 %v493, 7
      %v495 = vstv %s198
      %v496 = vadd.s32 %v495, %v494
      %vm497 = vcmp.lt.s32.totalorder %v496, 16
      %v498 = vsel %vm497, 1, 0
      %v499 = vcvt.s32.f32 %v498
      %vm500 = vcmask 7168
      %v501 = vsel %vm500, %v499, 0.0
      %502 = vadd.xlane.f32.xlu0 %v501
      %v503 = vpop.xlane.xlu0 %502
      %v504 = vrot.slane %v503, 4
      %v505 = vadd.f32 %v503, %v504
      %v506 = vrot.slane %v505, 2
      %v507 = vadd.f32 %v505, %v506
      %v508 = vrot.slane %v507, 1
      %v509 = vadd.f32 %v507, %v508
      %s510 = vtos %v509
      %512 = vrot.lane.b32.xlu0 %v482, 4
      %v513 = vpop.permute.xlu0 %512
      %v515 = vsub.f32 %v199, %v513
      %v516 = vmul.f32 %v515, %v515
      %v517 = vmul.f32 %v499, %v516
      %519 = vrot.lane.b32.xlu0 %v517, 124
      %v520 = vpop.permute.xlu0 %519
      %v522 = vsel %vm500, %v520, 0.0
      %523 = vadd.xlane.f32.xlu0 %v522
      %v524 = vpop.xlane.xlu0 %523
      %v525 = vrot.slane %v524, 4
      %v526 = vadd.f32 %v524, %v525
      %v527 = vrot.slane %v526, 2
      %v528 = vadd.f32 %v526, %v527
      %v529 = vrot.slane %v528, 1
      %v530 = vadd.f32 %v528, %v529
      %s531 = vtos %v530
      %v532 = vsub.f32 %v492, %v489
      %v533 = vmul.f32 %v499, %v532
      %v534 = vsel %vm500, %v533, 0.0
      %535 = vadd.xlane.f32.xlu0 %v534
      %v536 = vpop.xlane.xlu0 %535
      %v537 = vrot.slane %v536, 4
      %v538 = vadd.f32 %v536, %v537
      %v539 = vrot.slane %v538, 2
      %v540 = vadd.f32 %v538, %v539
      %v541 = vrot.slane %v540, 1
      %v542 = vadd.f32 %v540, %v541
      %s543 = vtos %v542
      %s544 = sadd.f32 %s510, %s543
      %s545 = sadd.f32 %s510, 0.0
      %s546 = sadd.f32 %s531, 0.0
      %s547 = sadd.f32 %s544, 0.0
      %s548 = smul.f32 %s545, 1.3836466
      %s549 = sadd.f32 %s546, %s547
      %s550 = smul.f32 %s549, 0.5
      %v551 = vrcp.pop 0.01
      %s552 = vtos %v551
      %s553 = smul.f32 %s550, %s552
      %s554 = ssub.f32 %s548, %s553
      %v555 = vstv %s554
      %556 = vst [vmem:[%s163] sm:$0x1] %v555
      %p557 = scmp.lt.s32.totalorder %s14, 1
      %s558 = scalar_select %p557, %s14, 1
      %s559 = scalar_lea.vmem %s3, %s558
      // Predicated region
      $region33: #{svgp_forward.1} parent=31 // pred_check
        %p560 = pneg %p100
      $region34: #{svgp_forward.1} parent=31 // pred_check_branch
        %562 = sbr.rel (%p560) target = $region36
      $region35: #{svgp_forward.1} parent=31 // pred_region
        _
      $region36: #{svgp_forward.1} parent=31 // pred_fallthru
        _
    $region32: #{svgp_forward.1} parent=5 // pred_fallthru
      _
    %p563 = scmp.le.s32.totalorder 2, %s9
    // Predicated region
    $region37: #{svgp_forward.1} parent=5 // pred_check
      %p564 = pneg %p563
    $region38: #{svgp_forward.1} parent=5 // pred_check_branch
      %566 = sbr.rel (%p564) target = $region40
    $region39: #{svgp_forward.1} parent=5 // pred_region
      %s567 = ssub.s32 %s9, 2
      // Predicated region
      $region41: #{svgp_forward.1} parent=39 // pred_check
        %p568 = pneg %p106
      $region42: #{svgp_forward.1} parent=39 // pred_check_branch
        %570 = sbr.rel (%p568) target = $region44
      $region43: #{svgp_forward.1} parent=39 // pred_region
        %p571 = scmp.lt.s32.totalorder %s15, 1
        %s572 = scalar_select %p571, %s15, 1
        %s573 = scalar_lea.vmem %s3, %s572
      $region44: #{svgp_forward.1} parent=39 // pred_fallthru
        _
    $region40: #{svgp_forward.1} parent=5 // pred_fallthru
      _
  $region6: #{svgp_forward.1} parent=0 // loop_footer
    %s13 = sadd.s32 1, %s9
  $region7: #{svgp_forward.1} parent=0 // loop_footer_branch
    %8 = sbr.rel target = $region3
  $region8: #{svgp_forward.1} parent=0 // loop_exit
    _

</llo_original>
